<compile_context>
chip_gen: v7x
topology: tpu7x:2x2x1
jax: 0.10.0
libtpu: 0.0.40
codegen_flags: <defaults>
</compile_context>

<pallas_src>
import functools

import jax
import jax.numpy as jnp
from jax.experimental import pallas as pl
from jax.experimental.pallas import tpu as pltpu

_LANE = 128
# Fused K=3*Cin only up to the v5e MXU contraction width (128) so the fused form is
# never worse than the 3-dot form on any generation (v6e/v7x are 256-wide).
_FUSE_K_MAX = 128
# Per-step pipeline budget (x + out, double-buffered).  Conservative for v7x's
# 64 MiB per-TC VMEM (scoped default 32 MiB); v5e/v6e have 128 MiB physical.
_PIPELINE_BUDGET_BYTES = 24 << 20


def _sublane_multiple(dtype):
    """Packed sublane count: 8 rows for 32-bit, 16 for 16-bit, 32 for 8-bit dtypes."""
    return 8 * max(1, 4 // jnp.dtype(dtype).itemsize)


def _convblock_kernel(x_ref, halo_ref, w3_ref, w1_ref, b3_ref, b1_ref, o_ref, *, fuse):
    # x_ref    : (TB, Cin, TL)     activation tile, NCL layout (L = lane axis)
    # halo_ref : (nl, TB, Cin, 2)  halo columns, resident across the L grid axis
    #                              [..., 0] = x[:, :, l*TL-1]   (zeros at l == 0)
    #                              [..., 1] = x[:, :, (l+1)*TL] (zeros at l == nl-1)
    # w3_ref   : (Cout, 3*Cin) if fuse else (3, Cout, Cin)
    # w1_ref   : (Cout, Cin)
    # b3_ref   : (Cout, 1) f32     b1_ref : (Cout, 1) f32
    # o_ref    : (TB, Cout, TL)
    l = pl.program_id(1)
    tb, cin, tl = x_ref.shape

    # Grid-invariant operands: loaded once per step, hoisted out of the batch loop.
    w1 = w1_ref[...]
    b3 = b3_ref[...]
    b1 = b1_ref[...]
    if fuse:
        w3 = w3_ref[...]                                       # (Cout, 3*Cin)
    else:
        w3_prev, w3_cur, w3_next = w3_ref[0], w3_ref[1], w3_ref[2]   # (Cout, Cin) each

    hv = halo_ref[l]                     # (TB, Cin, 2) halo columns for this L-tile

    lane_aligned = (tl % _LANE == 0)
    if lane_aligned:
        lane = jax.lax.broadcasted_iota(jnp.int32, (cin, tl), 1)
        is_first = lane == 0
        is_last = lane == tl - 1

    for i in range(tb):                  # small static batch block
        x_t = x_ref[i]                   # (Cin, TL)
        h = hv[i]                        # (Cin, 2)
        prev_col = h[:, 0:1]
        next_col = h[:, 1:2]
        if lane_aligned:
            # Lane roll runs on the XLU (free slot under a DMA/VALU-bound kernel);
            # only the sequence-boundary column is patched from the halo side-band,
            # which implements the pad=1 zero-padding at the sequence ends.
            prev_slab = jnp.where(is_first, prev_col, pltpu.roll(x_t, 1, axis=1))
            next_slab = jnp.where(is_last, next_col, pltpu.roll(x_t, tl - 1, axis=1))
        else:
            # TL == L < 128: tiny tile, build the shifts with a lane concat instead.
            prev_slab = jnp.concatenate([prev_col, x_t[:, : tl - 1]], axis=1)
            next_slab = jnp.concatenate([x_t[:, 1:], next_col], axis=1)

        if fuse:
            lhs = jnp.concatenate([prev_slab, x_t, next_slab], axis=0)   # (3*Cin, TL)
            y3 = jnp.dot(w3, lhs, preferred_element_type=jnp.float32)
        else:
            y3 = jnp.dot(w3_prev, prev_slab, preferred_element_type=jnp.float32)
            y3 = y3 + jnp.dot(w3_cur, x_t, preferred_element_type=jnp.float32)
            y3 = y3 + jnp.dot(w3_next, next_slab, preferred_element_type=jnp.float32)

        y1 = jnp.dot(w1, x_t, preferred_element_type=jnp.float32)        # 1x1 branch
        out = jnp.maximum(y3 + b3, 0.0) + y1 + b1      # ReLU only on the k=3 branch
        o_ref[i] = out.astype(o_ref.dtype)


def _pick_tiles(B, Cin, Cout, L, itemsize,
                budget_bytes=_PIPELINE_BUDGET_BYTES, tb_cap=8):
    """VMEM-derived tiling: largest lane-aligned TL dividing L that fits the
    double-buffered x+out budget, then the largest batch block TB that still fits
    and leaves at least a couple of grid steps for both TensorCores (v7x)."""
    row_bytes = 2 * (Cin + Cout) * itemsize        # one L-column of x+out, 2x buffered
    tl_cap = max(_LANE, budget_bytes // max(1, row_bytes))
    if L <= tl_cap:
        tl = L
    else:
        tl = 0
        t = (tl_cap // _LANE) * _LANE
        while t >= _LANE:
            if L % t == 0:
                tl = t
                break
            t -= _LANE
        if tl == 0:
            # No lane-aligned divisor fits the budget: single L tile.
            # TODO(synk): pad L to a multiple of 128 in the caller for very long,
            # oddly-sized sequences so the VMEM budget can always be respected.
            tl = L
    nl = L // tl
    tb = 1
    for cand in range(min(B, tb_cap), 0, -1):
        if B % cand:
            continue
        if cand > 1 and cand * tl * row_bytes > budget_bytes:
            continue
        if cand > 1 and (B // cand) * nl < 2 and B * nl >= 2:
            continue        # keep >= 2 grid steps so both TCs get work on v7x
        tb = cand
        break
    return tb, tl, nl


def _vmem_need_bytes(tb, tl, nl, Cin, Cout, itemsize):
    act = 2 * tb * tl * (Cin + Cout) * itemsize          # x + out, double-buffered
    halo = 2 * nl * tb * Cin * 2 * itemsize
    params = 2 * (4 * Cout * Cin * itemsize + 2 * Cout * 4)
    return act + halo + params


def conv_block_forward(x_ncl, w3_oik, b3, w1_oik, b1, *, tl=None, tb=None):
    """ConvBlock forward in the PyTorch layout. x_ncl: (B, Cin, L) -> (B, Cout, L)."""
    B, Cin, L = x_ncl.shape
    Cout = w3_oik.shape[0]
    dt = x_ncl.dtype
    isize = jnp.dtype(dt).itemsize

    auto_tb, auto_tl, _ = _pick_tiles(B, Cin, Cout, L, isize)
    if tl is None:
        tl = auto_tl
    if tb is None:
        tb = auto_tb
    if L % tl != 0:
        raise ValueError(f"tl={tl} must divide L={L} (pad L if needed)")
    if tl != L and tl % _LANE != 0:
        raise ValueError(f"tl={tl} must be a multiple of {_LANE} (lane axis) or equal L")
    if B % tb != 0:
        raise ValueError(f"tb={tb} must divide B={B}")
    nl = L // tl

    # Fuse the 3 taps into one K=3*Cin matmul only when the in-kernel sublane concat
    # is relayout-free and the fused K still fits the narrowest (v5e) MXU.
    fuse = (Cin % _sublane_multiple(dt) == 0) and (3 * Cin <= _FUSE_K_MAX)

    # ---- parameter layout (tiny, done once in the glue) -------------------------
    if fuse:
        # (Cout, Cin, 3) -> (Cout, 3*Cin) with K laid out as [k=0 | k=1 | k=2]
        w3_arr = jnp.transpose(w3_oik, (0, 2, 1)).reshape(Cout, 3 * Cin).astype(dt)
        w3_spec = pl.BlockSpec((Cout, 3 * Cin), lambda bb, l: (0, 0))
    else:
        # (Cout, Cin, 3) -> (3, Cout, Cin): one (Cout, Cin) slab per tap
        w3_arr = jnp.transpose(w3_oik, (2, 0, 1)).astype(dt)
        w3_spec = pl.BlockSpec((3, Cout, Cin), lambda bb, l: (0, 0, 0))
    w1_arr = w1_oik[:, :, 0].astype(dt)                        # (Cout, Cin)
    b3_2d = b3.astype(jnp.float32).reshape(Cout, 1)
    b1_2d = b1.astype(jnp.float32).reshape(Cout, 1)

    # ---- halo side-band: 2 boundary columns per (L-tile, batch) -----------------
    # Contiguous reshape + static slices (no strided gather).  Zeros at the sequence
    # ends implement the pad=1 semantics.  Shape (nl, B, Cin, 2); the kernel keeps it
    # resident per batch-block (grid-invariant along l) and indexes with program_id.
    xr = x_ncl.reshape(B, Cin, nl, tl)
    zcol = jnp.zeros((B, Cin, 1), dt)
    prev_cols = jnp.concatenate([zcol, xr[:, :, : nl - 1, tl - 1]], axis=2)  # (B,Cin,nl)
    next_cols = jnp.concatenate([xr[:, :, 1:, 0], zcol], axis=2)             # (B,Cin,nl)
    halo = jnp.transpose(jnp.stack([prev_cols, next_cols], axis=-1), (2, 0, 1, 3))

    vmem_need = _vmem_need_bytes(tb, tl, nl, Cin, Cout, isize)
    vmem_limit = max(32 << 20, int(1.25 * vmem_need) + (2 << 20))

    kernel = functools.partial(_convblock_kernel, fuse=fuse)

    out = pl.pallas_call(
        kernel,
        out_shape=jax.ShapeDtypeStruct((B, Cout, L), dt),
        grid_spec=pltpu.PrefetchScalarGridSpec(
            num_scalar_prefetch=0,
            grid=(B // tb, nl),
            in_specs=[
                pl.BlockSpec((tb, Cin, tl), lambda bb, l: (bb, 0, l)),        # x tile
                pl.BlockSpec((nl, tb, Cin, 2), lambda bb, l: (0, bb, 0, 0)),  # halo (resident over l)
                w3_spec,                                                      # k=3 weights
                pl.BlockSpec((Cout, Cin), lambda bb, l: (0, 0)),              # k=1 weights
                pl.BlockSpec((Cout, 1), lambda bb, l: (0, 0)),                # b3 (f32)
                pl.BlockSpec((Cout, 1), lambda bb, l: (0, 0)),                # b1 (f32)
            ],
            out_specs=pl.BlockSpec((tb, Cout, tl), lambda bb, l: (bb, 0, l)),
        ),
        # TODO(synk): pipeline_mode=pl.Buffered(3) on the x/out specs would deepen the
        # DMA lookahead for very short steps; left at the default depth here.
        compiler_params=pltpu.CompilerParams(
            dimension_semantics=("parallel", "parallel"),
            vmem_limit_bytes=vmem_limit),
    )(x_ncl, halo, w3_arr, w1_arr, b3_2d, b1_2d)
    return out


def conv_block_reference(x_ncl, w3_oik, b3, w1_oik, b1):
    """Pure-JAX reference of the PyTorch forward for verification."""
    out1 = jax.lax.conv_general_dilated(
        x_ncl, w3_oik, window_strides=(1,), padding=((1, 1),),
        dimension_numbers=("NCH", "OIH", "NCH"))
    out1 = jnp.maximum(out1 + b3[None, :, None], 0.0)
    out2 = jax.lax.conv_general_dilated(
        x_ncl, w1_oik, window_strides=(1,), padding=((0, 0),),
        dimension_numbers=("NCH", "OIH", "NCH"))
    return out1 + out2 + b1[None, :, None]


if __name__ == "__main__":
    key = jax.random.PRNGKey(0)

    def make_params(k, cin, cout):
        kw3, kb3, kw1, kb1 = jax.random.split(k, 4)
        w3 = jax.random.normal(kw3, (cout, cin, 3), jnp.float32) * 0.1
        b3 = jax.random.normal(kb3, (cout,), jnp.float32) * 0.1
        w1 = jax.random.normal(kw1, (cout, cin, 1), jnp.float32) * 0.1
        b1 = jax.random.normal(kb1, (cout,), jnp.float32) * 0.1
        return w3, b3, w1, b1

    kA, kB = jax.random.split(key)

    # Config A: small shapes (matches the module's typical tiny feature counts),
    # single L-tile, 3-dot path, auto tile selection.
    kx, kp = jax.random.split(kA)
    B, Cin, Cout, L = 2, 4, 8, 16
    x = jax.random.normal(kx, (B, Cin, L), jnp.float32)
    w3, b3, w1, b1 = make_params(kp, Cin, Cout)
    out = jax.block_until_ready(conv_block_forward(x, w3, b3, w1, b1))
    ref = conv_block_reference(x, w3, b3, w1, b1)
    assert out.shape == (B, Cout, L)
    assert jnp.allclose(out, ref, atol=1e-5, rtol=1e-5)

    # Config B: exercises the multi-L-tile halo path (roll + boundary patch),
    # the fused K=3*Cin matmul, and batch blocking.
    kx, kp = jax.random.split(kB)
    B, Cin, Cout, L = 4, 8, 16, 256
    x = jax.random.normal(kx, (B, Cin, L), jnp.float32)
    w3, b3, w1, b1 = make_params(kp, Cin, Cout)
    out = jax.block_until_ready(conv_block_forward(x, w3, b3, w1, b1, tl=128, tb=2))
    ref = conv_block_reference(x, w3, b3, w1, b1)
    assert out.shape == (B, Cout, L)
    assert jnp.allclose(out, ref, atol=1e-5, rtol=1e-5)

    print("KERNEL_OK")
</pallas_src>

<mosaic_0001>
module attributes {stable_mosaic.version = 11 : i64} {
  func.func @_convblock_kernel(%arg0: i32, %arg1: i32, %arg2: memref<1x4x16xf32, #tpu.memory_space<vmem>>, %arg3: memref<1x1x4x2xf32, #tpu.memory_space<vmem>>, %arg4: memref<3x8x4xf32, #tpu.memory_space<vmem>>, %arg5: memref<8x4xf32, #tpu.memory_space<vmem>>, %arg6: memref<8x1xf32, #tpu.memory_space<vmem>>, %arg7: memref<8x1xf32, #tpu.memory_space<vmem>>, %arg8: memref<1x8x16xf32, #tpu.memory_space<vmem>>) attributes {dimension_semantics = [#tpu.dimension_semantics<parallel>, #tpu.dimension_semantics<parallel>], iteration_bounds = array<i64: 2, 1>, scalar_prefetch = 0 : i64, scratch_operands = 0 : i64, tpu.core_type = #tpu.core_type<tc>, window_params = [{transform_indices = @transform_0, window_bounds = array<i64: 1, 4, 16>}, {transform_indices = @transform_1, window_bounds = array<i64: 1, 1, 4, 2>}, {pipeline_mode = #tpu.pipeline_mode<synchronous>, transform_indices = @transform_2, window_bounds = array<i64: 3, 8, 4>}, {pipeline_mode = #tpu.pipeline_mode<synchronous>, transform_indices = @transform_3, window_bounds = array<i64: 8, 4>}, {pipeline_mode = #tpu.pipeline_mode<synchronous>, transform_indices = @transform_4, window_bounds = array<i64: 8, 1>}, {pipeline_mode = #tpu.pipeline_mode<synchronous>, transform_indices = @transform_5, window_bounds = array<i64: 8, 1>}, {transform_indices = @transform_6, window_bounds = array<i64: 1, 8, 16>}]} {
    %c0 = arith.constant 0 : index
    %c0_0 = arith.constant 0 : index
    %0 = vector.load %arg5[%c0, %c0_0] : memref<8x4xf32, #tpu.memory_space<vmem>>, vector<8x4xf32>
    %c0_1 = arith.constant 0 : index
    %c0_2 = arith.constant 0 : index
    %1 = vector.load %arg6[%c0_1, %c0_2] : memref<8x1xf32, #tpu.memory_space<vmem>>, vector<8x1xf32>
    %c0_3 = arith.constant 0 : index
    %c0_4 = arith.constant 0 : index
    %2 = vector.load %arg7[%c0_3, %c0_4] : memref<8x1xf32, #tpu.memory_space<vmem>>, vector<8x1xf32>
    %c0_5 = arith.constant 0 : index
    %c0_6 = arith.constant 0 : index
    %c0_7 = arith.constant 0 : index
    %3 = vector.load %arg4[%c0_5, %c0_6, %c0_7] : memref<3x8x4xf32, #tpu.memory_space<vmem>>, vector<1x8x4xf32>
    %4 = vector.shape_cast %3 : vector<1x8x4xf32> to vector<8x4xf32>
    %c1 = arith.constant 1 : index
    %c0_8 = arith.constant 0 : index
    %c0_9 = arith.constant 0 : index
    %5 = vector.load %arg4[%c1, %c0_8, %c0_9] : memref<3x8x4xf32, #tpu.memory_space<vmem>>, vector<1x8x4xf32>
    %6 = vector.shape_cast %5 : vector<1x8x4xf32> to vector<8x4xf32>
    %c2 = arith.constant 2 : index
    %c0_10 = arith.constant 0 : index
    %c0_11 = arith.constant 0 : index
    %7 = vector.load %arg4[%c2, %c0_10, %c0_11] : memref<3x8x4xf32, #tpu.memory_space<vmem>>, vector<1x8x4xf32>
    %8 = vector.shape_cast %7 : vector<1x8x4xf32> to vector<8x4xf32>
    %9 = arith.index_cast %arg1 : i32 to index
    %c0_12 = arith.constant 0 : index
    %c0_13 = arith.constant 0 : index
    %c0_14 = arith.constant 0 : index
    %10 = vector.load %arg3[%9, %c0_12, %c0_13, %c0_14] : memref<1x1x4x2xf32, #tpu.memory_space<vmem>>, vector<1x1x4x2xf32>
    %11 = vector.shape_cast %10 : vector<1x1x4x2xf32> to vector<1x4x2xf32>
    %c0_15 = arith.constant 0 : index
    %c0_16 = arith.constant 0 : index
    %c0_17 = arith.constant 0 : index
    %12 = vector.load %arg2[%c0_15, %c0_16, %c0_17] : memref<1x4x16xf32, #tpu.memory_space<vmem>>, vector<1x4x16xf32>
    %13 = vector.shape_cast %12 : vector<1x4x16xf32> to vector<4x16xf32>
    %14 = vector.shape_cast %11 : vector<1x4x2xf32> to vector<4x2xf32>
    %15 = vector.extract_strided_slice %14 {offsets = [0, 0], sizes = [4, 1], strides = [1, 1]} : vector<4x2xf32> to vector<4x1xf32>
    %16 = vector.extract_strided_slice %14 {offsets = [0, 1], sizes = [4, 1], strides = [1, 1]} : vector<4x2xf32> to vector<4x1xf32>
    %17 = vector.extract_strided_slice %13 {offsets = [0, 0], sizes = [4, 15], strides = [1, 1]} : vector<4x16xf32> to vector<4x15xf32>
    %18 = tpu.concatenate %15, %17 in 1 : vector<4x1xf32>, vector<4x15xf32> -> vector<4x16xf32>
    %19 = vector.extract_strided_slice %13 {offsets = [0, 1], sizes = [4, 15], strides = [1, 1]} : vector<4x16xf32> to vector<4x15xf32>
    %20 = tpu.concatenate %19, %16 in 1 : vector<4x15xf32>, vector<4x1xf32> -> vector<4x16xf32>
    %cst = arith.constant dense<0.000000e+00> : vector<8x16xf32>
    %21 = tpu.matmul %4, %18, %cst {dimension_numbers = #tpu.dot_dimension_numbers<[1], [0], [0], [1], [0, 0, 1, 1], [], []>} : vector<8x4xf32>, vector<4x16xf32>, vector<8x16xf32> -> vector<8x16xf32>
    %cst_18 = arith.constant dense<0.000000e+00> : vector<8x16xf32>
    %22 = tpu.matmul %6, %13, %cst_18 {dimension_numbers = #tpu.dot_dimension_numbers<[1], [0], [0], [1], [0, 0, 1, 1], [], []>} : vector<8x4xf32>, vector<4x16xf32>, vector<8x16xf32> -> vector<8x16xf32>
    %23 = arith.addf %21, %22 : vector<8x16xf32>
    %cst_19 = arith.constant dense<0.000000e+00> : vector<8x16xf32>
    %24 = tpu.matmul %8, %20, %cst_19 {dimension_numbers = #tpu.dot_dimension_numbers<[1], [0], [0], [1], [0, 0, 1, 1], [], []>} : vector<8x4xf32>, vector<4x16xf32>, vector<8x16xf32> -> vector<8x16xf32>
    %25 = arith.addf %23, %24 : vector<8x16xf32>
    %cst_20 = arith.constant dense<0.000000e+00> : vector<8x16xf32>
    %26 = tpu.matmul %0, %13, %cst_20 {dimension_numbers = #tpu.dot_dimension_numbers<[1], [0], [0], [1], [0, 0, 1, 1], [], []>} : vector<8x4xf32>, vector<4x16xf32>, vector<8x16xf32> -> vector<8x16xf32>
    %27 = vector.broadcast %1 : vector<8x1xf32> to vector<8x16xf32>
    %28 = arith.addf %25, %27 : vector<8x16xf32>
    %cst_21 = arith.constant 0.000000e+00 : f32
    %29 = vector.broadcast %cst_21 : f32 to vector<8x16xf32>
    %30 = arith.maximumf %28, %29 : vector<8x16xf32>
    %31 = arith.addf %30, %26 : vector<8x16xf32>
    %32 = vector.broadcast %2 : vector<8x1xf32> to vector<8x16xf32>
    %33 = arith.addf %31, %32 : vector<8x16xf32>
    %c0_22 = arith.constant 0 : index
    %c0_23 = arith.constant 0 : index
    %c0_24 = arith.constant 0 : index
    %34 = vector.load %arg8[%c0_22, %c0_23, %c0_24] : memref<1x8x16xf32, #tpu.memory_space<vmem>>, vector<1x8x16xf32>
    %35 = vector.shape_cast %34 : vector<1x8x16xf32> to vector<8x16xf32>
    %36 = vector.shape_cast %33 : vector<8x16xf32> to vector<1x8x16xf32>
    tpu.vector_store %arg8[%c0_22, %c0_23, %c0_24], %36 {strides = array<i32>} : memref<1x8x16xf32, #tpu.memory_space<vmem>>, vector<1x8x16xf32>,
    return
  }
  func.func @transform_0(%arg0: i32, %arg1: i32) -> (i32, i32, i32) {
    %c0_i32 = arith.constant 0 : i32
    %c0_i32_0 = arith.constant 0 : i32
    return %arg0, %c0_i32, %arg1 : i32, i32, i32
  }
  func.func @transform_1(%arg0: i32, %arg1: i32) -> (i32, i32, i32, i32) {
    %c0_i32 = arith.constant 0 : i32
    %c0_i32_0 = arith.constant 0 : i32
    %c0_i32_1 = arith.constant 0 : i32
    %c0_i32_2 = arith.constant 0 : i32
    return %c0_i32, %arg0, %c0_i32_0, %c0_i32_1 : i32, i32, i32, i32
  }
  func.func @transform_2(%arg0: i32, %arg1: i32) -> (i32, i32, i32) {
    %c0_i32 = arith.constant 0 : i32
    %c0_i32_0 = arith.constant 0 : i32
    %c0_i32_1 = arith.constant 0 : i32
    %c0_i32_2 = arith.constant 0 : i32
    return %c0_i32, %c0_i32_0, %c0_i32_1 : i32, i32, i32
  }
  func.func @transform_3(%arg0: i32, %arg1: i32) -> (i32, i32) {
    %c0_i32 = arith.constant 0 : i32
    %c0_i32_0 = arith.constant 0 : i32
    %c0_i32_1 = arith.constant 0 : i32
    return %c0_i32, %c0_i32_0 : i32, i32
  }
  func.func @transform_4(%arg0: i32, %arg1: i32) -> (i32, i32) {
    %c0_i32 = arith.constant 0 : i32
    %c0_i32_0 = arith.constant 0 : i32
    %c0_i32_1 = arith.constant 0 : i32
    return %c0_i32, %c0_i32_0 : i32, i32
  }
  func.func @transform_5(%arg0: i32, %arg1: i32) -> (i32, i32) {
    %c0_i32 = arith.constant 0 : i32
    %c0_i32_0 = arith.constant 0 : i32
    %c0_i32_1 = arith.constant 0 : i32
    return %c0_i32, %c0_i32_0 : i32, i32
  }
  func.func @transform_6(%arg0: i32, %arg1: i32) -> (i32, i32, i32) {
    %c0_i32 = arith.constant 0 : i32
    %c0_i32_0 = arith.constant 0 : i32
    return %arg0, %c0_i32, %arg1 : i32, i32, i32
  }
}

</mosaic_0001>

<llo_original>
// kernel: tpu_custom_call.1
$region0: #{tpu_custom_call.1}
  #allocation0 [shape = 'u32[]', space=smem, size = 0x4, offset = 0x4, fixed_abs, tag = 'smem constant byte address 0x4 - core index']
  #allocation1 [shape = 'u32[144,128]{1,0:T(1,128)}', space=vmem, size = 0x12000, scoped, tag = 'internal scratch']
  %s0 = inlined_call_operand.vmem [shape: f32[2,4,16], index: 0, kind: input, shape index: {}]
  %s1 = inlined_call_operand.vmem [shape: f32[1,2,4,2], index: 1, kind: input, shape index: {}]
  %s2 = inlined_call_operand.vmem [shape: f32[3,8,4], index: 2, kind: input, shape index: {}]
  %s3 = inlined_call_operand.vmem [shape: f32[8,4], index: 3, kind: input, shape index: {}]
  %s4 = inlined_call_operand.vmem [shape: f32[8,1], index: 4, kind: input, shape index: {}]
  %s5 = inlined_call_operand.vmem [shape: f32[8,1], index: 5, kind: input, shape index: {}]
  %s6 = inlined_call_operand.hbm [shape: f32[2,8,16], index: 6, kind: output, shape index: {}]
  %s7 = sld [smem:[#allocation0]]
  $region57: #{tpu_custom_call.1} parent=0
    _
  %s9 = ssub.s32 1, %s7
  %s10 = scalar_select 0, %s9, %s7
  $region1: #{tpu_custom_call.1} parent=0
    #allocation2 [shape = 'u8[8192]{0}', space=vmem, size = 0x2000, scoped, tag = 'output window, operand 0']
    #allocation3 [shape = 's32[2]{0}', space=sflag, size = 0x8, scoped, tag = 'scoped memory for tpu_custom_call.1']
    %11 = vsyncpa [#allocation3], 0
    %s12 = scalar_lea.sflag [#allocation3], 1
    %13 = vsyncpa %s12, 0
    loop: start=0, step=1, limit=4
    $region2: #{tpu_custom_call.1} parent=1 // loop_pre_header
      _
    $region3: #{tpu_custom_call.1} parent=1 // loop_header
      %s15 = sphi 0, %s19
      %p16 = scmp.ge.s32.totalorder %s15, 4
      %s22 = sphi 0, %s34
      %s23 = sphi 0, %s30
      %s24 = sphi 0, %s22
      %s25 = sphi 0, %s23
      %s26 = sphi 0, %s24
      %s27 = sphi 0, %s25
      %s39 = sphi 0, %s41
      %s42 = sphi 0, %s39
      %s43 = sphi 0, %s42
      %s59 = sphi 0, %s43
      %s65 = sphi 0, %s67
      %s68 = sphi 0, %s65
      %s69 = sphi 0, %s68
      %s85 = sphi 0, %s69
      %s89 = sphi 0, %s89
      %s91 = sphi 0, %s89
      %s92 = sphi 0, %s91
      %s106 = sphi 0, %s92
      %s110 = sphi 0, %s110
      %s112 = sphi 0, %s110
      %s113 = sphi 0, %s112
      %s127 = sphi 0, %s113
      %s131 = sphi 0, %s131
      %s133 = sphi 0, %s131
      %s134 = sphi 0, %s133
      %s148 = sphi 0, %s134
      %s152 = sphi 0, %s152
      %s154 = sphi 0, %s152
      %s155 = sphi 0, %s154
      %s169 = sphi 0, %s155
      %s177 = sphi 0, %s179
      %s180 = sphi 0, %s177
      %s181 = sphi 0, %s180
      %s197 = sphi 0, %s181
    $region4: #{tpu_custom_call.1} parent=1 // loop_header_branch
      %18 = sbr.rel (%p16) target = $region8
    $region5: #{tpu_custom_call.1} parent=1 // loop_body
      %s20 = ssub.s32 %s15, 1
      %s21 = ssub.s32 %s15, 2
      %s28 = sadd.s32 1, %s23
      %p29 = scmp.ge.s32.totalorder %s28, 1
      %s30 = scalar_select %p29, 0, %s28
      %s31 = sadd.s32 1, %s22
      %s32 = scalar_select %p29, %s31, %s22
      %p33 = scmp.ge.s32.totalorder %s32, 2
      %s34 = scalar_select %p33, 0, %s32
      %s35 = ssub.s32 %s22, %s34
      %s36 = ssub.s32 %s23, %s30
      %s37 = sor.u32 %s35, %s36
      %p38 = scmp.eq.s32.totalorder %s37, 0
      %s40 = sadd.s32 %s39, 1
      %s41 = scalar_select %p38, %s39, %s40
      %p44 = pneg %p38
      %p45 = scmp.eq.s32.totalorder %s15, 1
      %p46 = por %p44, %p45
      %p47 = scmp.ne.s32.totalorder %s39, %s42
      %p48 = scmp.eq.s32.totalorder %s15, 0
      %p49 = por %p47, %p48
      %p50 = scmp.ne.s32.totalorder %s39, %s42
      %p51 = scmp.eq.s32.totalorder %s20, 1
      %p52 = por %p50, %p51
      %p53 = scmp.ne.s32.totalorder %s42, %s43
      %p54 = scmp.eq.s32.totalorder %s20, 0
      %p55 = por %p53, %p54
      %p56 = scmp.ne.s32.totalorder %s42, %s43
      %p57 = scmp.eq.s32.totalorder %s21, 1
      %p58 = por %p56, %p57
      %p60 = scmp.ne.s32.totalorder %s43, %s59
      %p61 = scmp.eq.s32.totalorder %s21, 0
      %p62 = por %p60, %p61
      %s63 = ssub.s32 %s22, %s34
      %p64 = scmp.eq.s32.totalorder %s63, 0
      %s66 = sadd.s32 %s65, 1
      %s67 = scalar_select %p64, %s65, %s66
      %p70 = pneg %p64
      %p71 = scmp.eq.s32.totalorder %s15, 1
      %p72 = por %p70, %p71
      %p73 = scmp.ne.s32.totalorder %s65, %s68
      %p74 = scmp.eq.s32.totalorder %s15, 0
      %p75 = por %p73, %p74
      %p76 = scmp.ne.s32.totalorder %s65, %s68
      %p77 = scmp.eq.s32.totalorder %s20, 1
      %p78 = por %p76, %p77
      %p79 = scmp.ne.s32.totalorder %s68, %s69
      %p80 = scmp.eq.s32.totalorder %s20, 0
      %p81 = por %p79, %p80
      %p82 = scmp.ne.s32.totalorder %s68, %s69
      %p83 = scmp.eq.s32.totalorder %s21, 1
      %p84 = por %p82, %p83
      %p86 = scmp.ne.s32.totalorder %s69, %s85
      %p87 = scmp.eq.s32.totalorder %s21, 0
      %p88 = por %p86, %p87
      %s90 = sadd.s32 %s89, 1
      %p93 = scmp.eq.s32.totalorder %s15, 1
      %p94 = scmp.ne.s32.totalorder %s89, %s91
      %p95 = scmp.eq.s32.totalorder %s15, 0
      %p96 = por %p94, %p95
      %p97 = scmp.ne.s32.totalorder %s89, %s91
      %p98 = scmp.eq.s32.totalorder %s20, 1
      %p99 = por %p97, %p98
      %p100 = scmp.ne.s32.totalorder %s91, %s92
      %p101 = scmp.eq.s32.totalorder %s20, 0
      %p102 = por %p100, %p101
      %p103 = scmp.ne.s32.totalorder %s91, %s92
      %p104 = scmp.eq.s32.totalorder %s21, 1
      %p105 = por %p103, %p104
      %p107 = scmp.ne.s32.totalorder %s92, %s106
      %p108 = scmp.eq.s32.totalorder %s21, 0
      %p109 = por %p107, %p108
      %s111 = sadd.s32 %s110, 1
      %p114 = scmp.eq.s32.totalorder %s15, 1
      %p115 = scmp.ne.s32.totalorder %s110, %s112
      %p116 = scmp.eq.s32.totalorder %s15, 0
      %p117 = por %p115, %p116
      %p118 = scmp.ne.s32.totalorder %s110, %s112
      %p119 = scmp.eq.s32.totalorder %s20, 1
      %p120 = por %p118, %p119
      %p121 = scmp.ne.s32.totalorder %s112, %s113
      %p122 = scmp.eq.s32.totalorder %s20, 0
      %p123 = por %p121, %p122
      %p124 = scmp.ne.s32.totalorder %s112, %s113
      %p125 = scmp.eq.s32.totalorder %s21, 1
      %p126 = por %p124, %p125
      %p128 = scmp.ne.s32.totalorder %s113, %s127
      %p129 = scmp.eq.s32.totalorder %s21, 0
      %p130 = por %p128, %p129
      %s132 = sadd.s32 %s131, 1
      %p135 = scmp.eq.s32.totalorder %s15, 1
      %p136 = scmp.ne.s32.totalorder %s131, %s133
      %p137 = scmp.eq.s32.totalorder %s15, 0
      %p138 = por %p136, %p137
      %p139 = scmp.ne.s32.totalorder %s131, %s133
      %p140 = scmp.eq.s32.totalorder %s20, 1
      %p141 = por %p139, %p140
      %p142 = scmp.ne.s32.totalorder %s133, %s134
      %p143 = scmp.eq.s32.totalorder %s20, 0
      %p144 = por %p142, %p143
      %p145 = scmp.ne.s32.totalorder %s133, %s134
      %p146 = scmp.eq.s32.totalorder %s21, 1
      %p147 = por %p145, %p146
      %p149 = scmp.ne.s32.totalorder %s134, %s148
      %p150 = scmp.eq.s32.totalorder %s21, 0
      %p151 = por %p149, %p150
      %s153 = sadd.s32 %s152, 1
      %p156 = scmp.eq.s32.totalorder %s15, 1
      %p157 = scmp.ne.s32.totalorder %s152, %s154
      %p158 = scmp.eq.s32.totalorder %s15, 0
      %p159 = por %p157, %p158
      %p160 = scmp.ne.s32.totalorder %s152, %s154
      %p161 = scmp.eq.s32.totalorder %s20, 1
      %p162 = por %p160, %p161
      %p163 = scmp.ne.s32.totalorder %s154, %s155
      %p164 = scmp.eq.s32.totalorder %s20, 0
      %p165 = por %p163, %p164
      %p166 = scmp.ne.s32.totalorder %s154, %s155
      %p167 = scmp.eq.s32.totalorder %s21, 1
      %p168 = por %p166, %p167
      %p170 = scmp.ne.s32.totalorder %s155, %s169
      %p171 = scmp.eq.s32.totalorder %s21, 0
      %p172 = por %p170, %p171
      %s173 = ssub.s32 %s22, %s34
      %s174 = ssub.s32 %s23, %s30
      %s175 = sor.u32 %s173, %s174
      %p176 = scmp.eq.s32.totalorder %s175, 0
      %s178 = sadd.s32 %s177, 1
      %s179 = scalar_select %p176, %s177, %s178
      %p182 = pneg %p176
      %p183 = scmp.eq.s32.totalorder %s15, 1
      %p184 = por %p182, %p183
      %p185 = scmp.ne.s32.totalorder %s177, %s180
      %p186 = scmp.eq.s32.totalorder %s15, 0
      %p187 = por %p185, %p186
      %p188 = scmp.ne.s32.totalorder %s177, %s180
      %p189 = scmp.eq.s32.totalorder %s20, 1
      %p190 = por %p188, %p189
      %p191 = scmp.ne.s32.totalorder %s180, %s181
      %p192 = scmp.eq.s32.totalorder %s20, 0
      %p193 = por %p191, %p192
      %p194 = scmp.ne.s32.totalorder %s180, %s181
      %p195 = scmp.eq.s32.totalorder %s21, 1
      %p196 = por %p194, %p195
      %p198 = scmp.ne.s32.totalorder %s181, %s197
      %p199 = scmp.eq.s32.totalorder %s21, 0
      %p200 = por %p198, %p199
      %p201 = scmp.le.s32.totalorder 1, %s15
      %p202 = scmp.lt.s32.totalorder %s15, 3
      %p203 = pnand %p201, %p202
      %p204 = pneg %p203
      // Predicated region
      $region9: #{tpu_custom_call.1} parent=5 // pred_check
        _
      $region10: #{tpu_custom_call.1} parent=5 // pred_check_branch
        %206 = sbr.rel (%p203) target = $region12
      $region11: #{tpu_custom_call.1} parent=5 // pred_region
        %s207 = ssub.s32 %s15, 1
        // Predicated region
        $region13: #{tpu_custom_call.1} parent=11 // pred_check
          %p208 = pneg %p102
        $region14: #{tpu_custom_call.1} parent=11 // pred_check_branch
          %210 = sbr.rel (%p208) target = $region16
        $region15: #{tpu_custom_call.1} parent=11 // pred_region
          _
        $region16: #{tpu_custom_call.1} parent=11 // pred_fallthru
          _
        // Predicated region
        $region17: #{tpu_custom_call.1} parent=11 // pred_check
          %p211 = pneg %p123
        $region18: #{tpu_custom_call.1} parent=11 // pred_check_branch
          %213 = sbr.rel (%p211) target = $region20
        $region19: #{tpu_custom_call.1} parent=11 // pred_region
          _
        $region20: #{tpu_custom_call.1} parent=11 // pred_fallthru
          _
        // Predicated region
        $region21: #{tpu_custom_call.1} parent=11 // pred_check
          %p214 = pneg %p144
        $region22: #{tpu_custom_call.1} parent=11 // pred_check_branch
          %216 = sbr.rel (%p214) target = $region24
        $region23: #{tpu_custom_call.1} parent=11 // pred_region
          _
        $region24: #{tpu_custom_call.1} parent=11 // pred_fallthru
          _
        // Predicated region
        $region25: #{tpu_custom_call.1} parent=11 // pred_check
          %p217 = pneg %p165
        $region26: #{tpu_custom_call.1} parent=11 // pred_check_branch
          %219 = sbr.rel (%p217) target = $region28
        $region27: #{tpu_custom_call.1} parent=11 // pred_region
          _
        $region28: #{tpu_custom_call.1} parent=11 // pred_fallthru
          _
      $region12: #{tpu_custom_call.1} parent=5 // pred_fallthru
        _
      %p220 = scmp.lt.s32.totalorder %s15, 2
      // Predicated region
      $region29: #{tpu_custom_call.1} parent=5 // pred_check
        %p221 = pneg %p220
      $region30: #{tpu_custom_call.1} parent=5 // pred_check_branch
        %223 = sbr.rel (%p221) target = $region32
      $region31: #{tpu_custom_call.1} parent=5 // pred_region
        // Predicated region
        $region33: #{tpu_custom_call.1} parent=31 // pred_check
          %p224 = pneg %p49
        $region34: #{tpu_custom_call.1} parent=31 // pred_check_branch
          %226 = sbr.rel (%p224) target = $region36
        $region35: #{tpu_custom_call.1} parent=31 // pred_region
          %p227 = scmp.lt.s32.totalorder %s22, 1
          %s228 = scalar_select %p227, %s22, 1
          %p229 = scmp.lt.s32.totalorder %s23, 0
          %s230 = scalar_select %p229, %s23, 0
          %s231 = sadd.s32 %s230, %s228
          %s232 = smul.addr %s231, 4
          %s233 = scalar_lea.vmem %s0, %s232
        $region36: #{tpu_custom_call.1} parent=31 // pred_fallthru
          _
        // Predicated region
        $region37: #{tpu_custom_call.1} parent=31 // pred_check
          %p234 = pneg %p75
        $region38: #{tpu_custom_call.1} parent=31 // pred_check_branch
          %236 = sbr.rel (%p234) target = $region40
        $region39: #{tpu_custom_call.1} parent=31 // pred_region
          %p237 = scmp.lt.s32.totalorder %s22, 1
          %s238 = scalar_select %p237, %s22, 1
          %s239 = smul.addr %s238, 4
          %s240 = scalar_lea.vmem %s1, %s239
        $region40: #{tpu_custom_call.1} parent=31 // pred_fallthru
          _
      $region32: #{tpu_custom_call.1} parent=5 // pred_fallthru
        _
      %p241 = scmp.le.s32.totalorder 1, %s15
      %p242 = scmp.lt.s32.totalorder %s15, 3
      %p243 = pnand %p241, %p242
      %p244 = pneg %p243
      // Predicated region
      $region41: #{tpu_custom_call.1} parent=5 // pred_check
        _
      $region42: #{tpu_custom_call.1} parent=5 // pred_check_branch
        %246 = sbr.rel (%p243) target = $region44
      $region43: #{tpu_custom_call.1} parent=5 // pred_region
        %s247 = ssub.s32 %s15, 1
        %p248 = scmp.lt.s32.totalorder %s24, 1
        %s249 = scalar_select %p248, %s24, 1
        %p250 = scmp.lt.s32.totalorder %s25, 0
        %s251 = scalar_select %p250, %s25, 0
        %s252 = sadd.s32 %s251, %s249
        %s253 = smul.addr %s252, 4
        %s254 = scalar_lea.vmem %s0, %s253
        %p255 = pneg %p55
        %p256 = pneg %p52
        %p257 = scmp.lt.s32.totalorder %s24, 1
        %s258 = scalar_select %p257, %s24, 1
        %s259 = smul.addr %s258, 4
        %s260 = scalar_lea.vmem %s1, %s259
        %p261 = pneg %p81
        %p262 = pneg %p78
        %p263 = pneg %p102
        %p264 = pneg %p99
        %p265 = pneg %p123
        %p266 = pneg %p120
        %p267 = pneg %p144
        %p268 = pneg %p141
        %p269 = pneg %p165
        %p270 = pneg %p162
        %p271 = pneg %p193
        %p272 = pneg %p190
        %s273 = sand.u32 %s180, 1
        %s274 = scalar_lea.sflag [#allocation3], %s273
        %s275 = sand.u32 %s180, 1
        %s276 = smul.addr %s275, 8
        %s277 = scalar_lea.vmem [#allocation2], %s276
        %p278 = scmp.lt.s32.totalorder %s24, 1
        %s279 = scalar_select %p278, %s24, 1
        %p280 = scmp.lt.s32.totalorder %s25, 0
        %s281 = scalar_select %p280, %s25, 0
        %s282 = sadd.s32 %s281, %s279
        %s283 = smul.addr %s282, 4
        %s284 = scalar_lea.vmem %s0, %s283
        %p285 = scmp.lt.s32.totalorder %s24, 1
        %s286 = scalar_select %p285, %s24, 1
        %s287 = smul.addr %s286, 4
        %s288 = scalar_lea.vmem %s1, %s287
        %v289 = vld [vmem:[%s3] sm:$0xff]
        %v290 = vld [vmem:[%s4] sm:$0xff]
        %v291 = vld [vmem:[%s5] sm:$0xff]
        %v292 = vld [vmem:[%s2] sm:$0xff]
        %s293 = scalar_lea.vmem %s2, 8
        %v294 = vld [vmem:[%s293] sm:$0xff]
        %s295 = scalar_lea.vmem %s2, 16
        %v296 = vld [vmem:[%s295] sm:$0xff]
        %s297 = smul.u32 %s25, 4
        %s298 = scalar_lea.vmem %s288, %s297
        %v299 = vld [vmem:[%s298] sm:$0xf]
        %v300 = vld [vmem:[%s284] sm:$0xf]
        %302 = vrot.lane.b32.xlu0 %v300, 1
        %v303 = vpop.permute.xlu0 %302
        %vm305 = vcmask 7168
        %v306 = vsel %vm305, %v299, %v303
        %307 = vrot.lane.b32.xlu0 %v300, 127
        %v308 = vpop.permute.xlu0 %307
        %311 = vrot.lane.b32.xlu0 %v299, 14
        %v312 = vpop.permute.xlu0 %311
        %vm314 = vcmask 121856
        %v315 = vsel %vm314, %v308, %v312
        %vm316 = vcmask 31744
        %v318 = vsel %vm316, %v294, 0
        %vm320 = vcmask 1043456
        %v321 = vsel %vm320, %v300, 0
        %323 = vmatprep.subr.mxu0 0.0
        %324 = vmatpush1.msra.mxu0 %v321
        %325 = vmatprep.subr.mxu0 0.0
        %326 = vmatpush1.msra.mxu0 0.0
        %327 = vmatprep.subr.mxu0 0.0
        %328 = vmatpush1.msra.mxu0 0.0
        %329 = vmatprep.subr.mxu0 0.0
        %330 = vmatpush1.msra.mxu0 0.0
        %331 = vmatprep.subr.mxu0 0.0
        %332 = vmatpush1.msra.mxu0 0.0
        %333 = vmatprep.subr.mxu0 0.0
        %334 = vmatpush1.msra.mxu0 0.0
        %335 = vmatprep.subr.mxu0 0.0
        %336 = vmatpush1.msra.mxu0 0.0
        %337 = vmatprep.subr.mxu0 0.0
        %338 = vmatpush1.msra.mxu0 0.0
        %339 = vmatprep.subr.mxu0 0.0
        %340 = vmatpush1.msra.mxu0 0.0
        %341 = vmatprep.subr.mxu0 0.0
        %342 = vmatpush1.msra.mxu0 0.0
        %343 = vmatprep.subr.mxu0 0.0
        %344 = vmatpush1.msra.mxu0 0.0
        %345 = vmatprep.subr.mxu0 0.0
        %346 = vmatpush1.msra.mxu0 0.0
        %347 = vmatprep.subr.mxu0 0.0
        %348 = vmatpush1.msra.mxu0 0.0
        %349 = vmatprep.subr.mxu0 0.0
        %350 = vmatpush1.msra.mxu0 0.0
        %351 = vmatprep.subr.mxu0 0.0
        %352 = vmatpush1.msra.mxu0 0.0
        %353 = vmatprep.subr.mxu0 0.0
        %354 = vmatpush1.msra.mxu0 0.0
        %355 = vmatprep.subr.mxu0 0.0
        %356 = vmatpush1.msra.mxu0 0.0
        %357 = vmatprep.subr.mxu0 0.0
        %358 = vmatpush1.msra.mxu0 0.0
        %359 = vmatprep.subr.mxu0 0.0
        %360 = vmatpush1.msra.mxu0 0.0
        %361 = vmatprep.subr.mxu0 0.0
        %362 = vmatpush1.msra.mxu0 0.0
        %363 = vmatprep.subr.mxu0 0.0
        %364 = vmatpush1.msra.mxu0 0.0
        %365 = vmatprep.subr.mxu0 0.0
        %366 = vmatpush1.msra.mxu0 0.0
        %367 = vmatprep.subr.mxu0 0.0
        %368 = vmatpush1.msra.mxu0 0.0
        %369 = vmatprep.subr.mxu0 0.0
        %370 = vmatpush1.msra.mxu0 0.0
        %371 = vmatprep.subr.mxu0 0.0
        %372 = vmatpush1.msra.mxu0 0.0
        %373 = vmatprep.subr.mxu0 0.0
        %374 = vmatpush1.msra.mxu0 0.0
        %375 = vmatprep.subr.mxu0 0.0
        %376 = vmatpush1.msra.mxu0 0.0
        %377 = vmatprep.subr.mxu0 0.0
        %378 = vmatpush1.msra.mxu0 0.0
        %379 = vmatprep.subr.mxu0 0.0
        %380 = vmatpush1.msra.mxu0 0.0
        %381 = vmatprep.subr.mxu0 0.0
        %382 = vmatpush1.msra.mxu0 0.0
        %383 = vmatprep.subr.mxu0 0.0
        %384 = vmatpush1.msra.mxu0 0.0
        %385 = vmatprep.subr.mxu0 0.0
        %386 = vmatpush1.msra.mxu0 0.0
        %387 = vmatprep.mubr.f32.mxu0 0.0
        %388 = vmatmul.mubr.f32.gmra.mrb[0].mxu0 %v318
        %v389 = vpop.f32.mrb[0].mxu0
        %v390 = vadd.f32 0.0, %v389
        %v391 = vpop.f32.mrb[0].mxu0
        %392 = vdwg.mxu0
        %v394 = vsel %vm316, %v292, 0
        %v397 = vsel %vm320, %v306, 0
        %399 = vmatprep.subr.mxu0 0.0
        %400 = vmatpush1.msra.mxu0 %v397
        %401 = vmatprep.subr.mxu0 0.0
        %402 = vmatpush1.msra.mxu0 0.0
        %403 = vmatprep.subr.mxu0 0.0
        %404 = vmatpush1.msra.mxu0 0.0
        %405 = vmatprep.subr.mxu0 0.0
        %406 = vmatpush1.msra.mxu0 0.0
        %407 = vmatprep.subr.mxu0 0.0
        %408 = vmatpush1.msra.mxu0 0.0
        %409 = vmatprep.subr.mxu0 0.0
        %410 = vmatpush1.msra.mxu0 0.0
        %411 = vmatprep.subr.mxu0 0.0
        %412 = vmatpush1.msra.mxu0 0.0
        %413 = vmatprep.subr.mxu0 0.0
        %414 = vmatpush1.msra.mxu0 0.0
        %415 = vmatprep.subr.mxu0 0.0
        %416 = vmatpush1.msra.mxu0 0.0
        %417 = vmatprep.subr.mxu0 0.0
        %418 = vmatpush1.msra.mxu0 0.0
        %419 = vmatprep.subr.mxu0 0.0
        %420 = vmatpush1.msra.mxu0 0.0
        %421 = vmatprep.subr.mxu0 0.0
        %422 = vmatpush1.msra.mxu0 0.0
        %423 = vmatprep.subr.mxu0 0.0
        %424 = vmatpush1.msra.mxu0 0.0
        %425 = vmatprep.subr.mxu0 0.0
        %426 = vmatpush1.msra.mxu0 0.0
        %427 = vmatprep.subr.mxu0 0.0
        %428 = vmatpush1.msra.mxu0 0.0
        %429 = vmatprep.subr.mxu0 0.0
        %430 = vmatpush1.msra.mxu0 0.0
        %431 = vmatprep.subr.mxu0 0.0
        %432 = vmatpush1.msra.mxu0 0.0
        %433 = vmatprep.subr.mxu0 0.0
        %434 = vmatpush1.msra.mxu0 0.0
        %435 = vmatprep.subr.mxu0 0.0
        %436 = vmatpush1.msra.mxu0 0.0
        %437 = vmatprep.subr.mxu0 0.0
        %438 = vmatpush1.msra.mxu0 0.0
        %439 = vmatprep.subr.mxu0 0.0
        %440 = vmatpush1.msra.mxu0 0.0
        %441 = vmatprep.subr.mxu0 0.0
        %442 = vmatpush1.msra.mxu0 0.0
        %443 = vmatprep.subr.mxu0 0.0
        %444 = vmatpush1.msra.mxu0 0.0
        %445 = vmatprep.subr.mxu0 0.0
        %446 = vmatpush1.msra.mxu0 0.0
        %447 = vmatprep.subr.mxu0 0.0
        %448 = vmatpush1.msra.mxu0 0.0
        %449 = vmatprep.subr.mxu0 0.0
        %450 = vmatpush1.msra.mxu0 0.0
        %451 = vmatprep.subr.mxu0 0.0
        %452 = vmatpush1.msra.mxu0 0.0
        %453 = vmatprep.subr.mxu0 0.0
        %454 = vmatpush1.msra.mxu0 0.0
        %455 = vmatprep.subr.mxu0 0.0
        %456 = vmatpush1.msra.mxu0 0.0
        %457 = vmatprep.subr.mxu0 0.0
        %458 = vmatpush1.msra.mxu0 0.0
        %459 = vmatprep.subr.mxu0 0.0
        %460 = vmatpush1.msra.mxu0 0.0
        %461 = vmatprep.subr.mxu0 0.0
        %462 = vmatpush1.msra.mxu0 0.0
        %463 = vmatprep.mubr.f32.mxu0 0.0
        %464 = vmatmul.mubr.f32.gmra.mrb[0].mxu0 %v394
        %v465 = vpop.f32.mrb[0].mxu0
        %v466 = vadd.f32 %v390, %v465
        %v467 = vpop.f32.mrb[0].mxu0
        %468 = vdwg.mxu0
        %v470 = vsel %vm316, %v296, 0
        %v473 = vsel %vm320, %v315, 0
        %475 = vmatprep.subr.mxu0 0.0
        %476 = vmatpush1.msra.mxu0 %v473
        %477 = vmatprep.subr.mxu0 0.0
        %478 = vmatpush1.msra.mxu0 0.0
        %479 = vmatprep.subr.mxu0 0.0
        %480 = vmatpush1.msra.mxu0 0.0
        %481 = vmatprep.subr.mxu0 0.0
        %482 = vmatpush1.msra.mxu0 0.0
        %483 = vmatprep.subr.mxu0 0.0
        %484 = vmatpush1.msra.mxu0 0.0
        %485 = vmatprep.subr.mxu0 0.0
        %486 = vmatpush1.msra.mxu0 0.0
        %487 = vmatprep.subr.mxu0 0.0
        %488 = vmatpush1.msra.mxu0 0.0
        %489 = vmatprep.subr.mxu0 0.0
        %490 = vmatpush1.msra.mxu0 0.0
        %491 = vmatprep.subr.mxu0 0.0
        %492 = vmatpush1.msra.mxu0 0.0
        %493 = vmatprep.subr.mxu0 0.0
        %494 = vmatpush1.msra.mxu0 0.0
        %495 = vmatprep.subr.mxu0 0.0
        %496 = vmatpush1.msra.mxu0 0.0
        %497 = vmatprep.subr.mxu0 0.0
        %498 = vmatpush1.msra.mxu0 0.0
        %499 = vmatprep.subr.mxu0 0.0
        %500 = vmatpush1.msra.mxu0 0.0
        %501 = vmatprep.subr.mxu0 0.0
        %502 = vmatpush1.msra.mxu0 0.0
        %503 = vmatprep.subr.mxu0 0.0
        %504 = vmatpush1.msra.mxu0 0.0
        %505 = vmatprep.subr.mxu0 0.0
        %506 = vmatpush1.msra.mxu0 0.0
        %507 = vmatprep.subr.mxu0 0.0
        %508 = vmatpush1.msra.mxu0 0.0
        %509 = vmatprep.subr.mxu0 0.0
        %510 = vmatpush1.msra.mxu0 0.0
        %511 = vmatprep.subr.mxu0 0.0
        %512 = vmatpush1.msra.mxu0 0.0
        %513 = vmatprep.subr.mxu0 0.0
        %514 = vmatpush1.msra.mxu0 0.0
        %515 = vmatprep.subr.mxu0 0.0
        %516 = vmatpush1.msra.mxu0 0.0
        %517 = vmatprep.subr.mxu0 0.0
        %518 = vmatpush1.msra.mxu0 0.0
        %519 = vmatprep.subr.mxu0 0.0
        %520 = vmatpush1.msra.mxu0 0.0
        %521 = vmatprep.subr.mxu0 0.0
        %522 = vmatpush1.msra.mxu0 0.0
        %523 = vmatprep.subr.mxu0 0.0
        %524 = vmatpush1.msra.mxu0 0.0
        %525 = vmatprep.subr.mxu0 0.0
        %526 = vmatpush1.msra.mxu0 0.0
        %527 = vmatprep.subr.mxu0 0.0
        %528 = vmatpush1.msra.mxu0 0.0
        %529 = vmatprep.subr.mxu0 0.0
        %530 = vmatpush1.msra.mxu0 0.0
        %531 = vmatprep.subr.mxu0 0.0
        %532 = vmatpush1.msra.mxu0 0.0
        %533 = vmatprep.subr.mxu0 0.0
        %534 = vmatpush1.msra.mxu0 0.0
        %535 = vmatprep.subr.mxu0 0.0
        %536 = vmatpush1.msra.mxu0 0.0
        %537 = vmatprep.subr.mxu0 0.0
        %538 = vmatpush1.msra.mxu0 0.0
        %539 = vmatprep.mubr.f32.mxu0 0.0
        %540 = vmatmul.mubr.f32.gmra.mrb[0].mxu0 %v470
        %v541 = vpop.f32.mrb[0].mxu0
        %v542 = vadd.f32 0.0, %v541
        %v543 = vpop.f32.mrb[0].mxu0
        %544 = vdwg.mxu0
        %v545 = vadd.f32 %v466, %v542
        %v547 = vsel %vm316, %v289, 0
        %549 = vmatprep.subr.mxu0 0.0
        %550 = vmatpush1.msra.mxu0 %v321
        %551 = vmatprep.subr.mxu0 0.0
        %552 = vmatpush1.msra.mxu0 0.0
        %553 = vmatprep.subr.mxu0 0.0
        %554 = vmatpush1.msra.mxu0 0.0
        %555 = vmatprep.subr.mxu0 0.0
        %556 = vmatpush1.msra.mxu0 0.0
        %557 = vmatprep.subr.mxu0 0.0
        %558 = vmatpush1.msra.mxu0 0.0
        %559 = vmatprep.subr.mxu0 0.0
        %560 = vmatpush1.msra.mxu0 0.0
        %561 = vmatprep.subr.mxu0 0.0
        %562 = vmatpush1.msra.mxu0 0.0
        %563 = vmatprep.subr.mxu0 0.0
        %564 = vmatpush1.msra.mxu0 0.0
        %565 = vmatprep.subr.mxu0 0.0
        %566 = vmatpush1.msra.mxu0 0.0
        %567 = vmatprep.subr.mxu0 0.0
        %568 = vmatpush1.msra.mxu0 0.0
        %569 = vmatprep.subr.mxu0 0.0
        %570 = vmatpush1.msra.mxu0 0.0
        %571 = vmatprep.subr.mxu0 0.0
        %572 = vmatpush1.msra.mxu0 0.0
        %573 = vmatprep.subr.mxu0 0.0
        %574 = vmatpush1.msra.mxu0 0.0
        %575 = vmatprep.subr.mxu0 0.0
        %576 = vmatpush1.msra.mxu0 0.0
        %577 = vmatprep.subr.mxu0 0.0
        %578 = vmatpush1.msra.mxu0 0.0
        %579 = vmatprep.subr.mxu0 0.0
        %580 = vmatpush1.msra.mxu0 0.0
        %581 = vmatprep.subr.mxu0 0.0
        %582 = vmatpush1.msra.mxu0 0.0
        %583 = vmatprep.subr.mxu0 0.0
        %584 = vmatpush1.msra.mxu0 0.0
        %585 = vmatprep.subr.mxu0 0.0
        %586 = vmatpush1.msra.mxu0 0.0
        %587 = vmatprep.subr.mxu0 0.0
        %588 = vmatpush1.msra.mxu0 0.0
        %589 = vmatprep.subr.mxu0 0.0
        %590 = vmatpush1.msra.mxu0 0.0
        %591 = vmatprep.subr.mxu0 0.0
        %592 = vmatpush1.msra.mxu0 0.0
        %593 = vmatprep.subr.mxu0 0.0
        %594 = vmatpush1.msra.mxu0 0.0
        %595 = vmatprep.subr.mxu0 0.0
        %596 = vmatpush1.msra.mxu0 0.0
        %597 = vmatprep.subr.mxu0 0.0
        %598 = vmatpush1.msra.mxu0 0.0
        %599 = vmatprep.subr.mxu0 0.0
        %600 = vmatpush1.msra.mxu0 0.0
        %601 = vmatprep.subr.mxu0 0.0
        %602 = vmatpush1.msra.mxu0 0.0
        %603 = vmatprep.subr.mxu0 0.0
        %604 = vmatpush1.msra.mxu0 0.0
        %605 = vmatprep.subr.mxu0 0.0
        %606 = vmatpush1.msra.mxu0 0.0
        %607 = vmatprep.subr.mxu0 0.0
        %608 = vmatpush1.msra.mxu0 0.0
        %609 = vmatprep.subr.mxu0 0.0
        %610 = vmatpush1.msra.mxu0 0.0
        %611 = vmatprep.subr.mxu0 0.0
        %612 = vmatpush1.msra.mxu0 0.0
        %613 = vmatprep.mubr.f32.mxu0 0.0
        %614 = vmatmul.mubr.f32.gmra.mrb[0].mxu0 %v547
        %v615 = vpop.f32.mrb[0].mxu0
        %v616 = vadd.f32 0.0, %v615
        %v617 = vpop.f32.mrb[0].mxu0
        %618 = vdwg.mxu0
        %620 = vset.pattern.permute.xlu0 0
        %621 = vperm.xlu0 %620, %v290
        %v622 = vpop.permute.xlu0 %621
        %v624 = vadd.f32 %v545, %v622
        %v625 = vmax.f32 %v624, 0.0
        %v626 = vadd.f32 %v625, %v616
        %628 = vset.pattern.permute.xlu0 0
        %629 = vperm.xlu0 %628, %v291
        %v630 = vpop.permute.xlu0 %629
        %v632 = vadd.f32 %v626, %v630
        %vm633 = vcmask 130048
        %634 = vst.msk [vmem:[%s277] sm:$0xff] %vm633, %v632
        %s635 = sand.u32 %s180, 1
        %s636 = scalar_lea.sflag [#allocation3], %s635
        %s637 = sand.u32 %s180, 1
        %s638 = smul.addr %s637, 8
        %s639 = scalar_lea.vmem [#allocation2], %s638
        // Predicated region
        $region45: #{tpu_custom_call.1} parent=43 // pred_check
          %p640 = pneg %p190
        $region46: #{tpu_custom_call.1} parent=43 // pred_check_branch
          %642 = sbr.rel (%p640) target = $region48
        $region47: #{tpu_custom_call.1} parent=43 // pred_region
          %s644 = ssub.s32 128, 128
          %645 = vsyncadd %s636, %s644
          %s646 = sadd.s32 %s25, %s24
          %s647 = smul.addr %s646, 128
          %s648 = scalar_lea.hbm %s6, %s647
          %s650 = sshll.u32 %s639, 4
          %s651 = int_to_ptr.vmem [resolvable:$true] %s650
          %653 = dma.vmem_to_hbm [thread:$0]  %s651, 128, %s648, %s636
        $region48: #{tpu_custom_call.1} parent=43 // pred_fallthru
          _
      $region44: #{tpu_custom_call.1} parent=5 // pred_fallthru
        _
      %p654 = scmp.le.s32.totalorder 2, %s15
      // Predicated region
      $region49: #{tpu_custom_call.1} parent=5 // pred_check
        %p655 = pneg %p654
      $region50: #{tpu_custom_call.1} parent=5 // pred_check_branch
        %657 = sbr.rel (%p655) target = $region52
      $region51: #{tpu_custom_call.1} parent=5 // pred_region
        %s658 = ssub.s32 %s15, 2
        // Predicated region
        $region53: #{tpu_custom_call.1} parent=51 // pred_check
          %p659 = pneg %p196
        $region54: #{tpu_custom_call.1} parent=51 // pred_check_branch
          %661 = sbr.rel (%p659) target = $region56
        $region55: #{tpu_custom_call.1} parent=51 // pred_region
          %s662 = sand.u32 %s181, 1
          %s663 = scalar_lea.sflag [#allocation3], %s662
          %s664 = sand.u32 %s181, 1
          %s665 = smul.addr %s664, 8
          %s666 = scalar_lea.vmem [#allocation2], %s665
          %667 = dma.done %s663, 128
        $region56: #{tpu_custom_call.1} parent=51 // pred_fallthru
          _
      $region52: #{tpu_custom_call.1} parent=5 // pred_fallthru
        _
    $region6: #{tpu_custom_call.1} parent=1 // loop_footer
      %s19 = sadd.s32 1, %s15
    $region7: #{tpu_custom_call.1} parent=1 // loop_footer_branch
      %14 = sbr.rel target = $region3
    $region8: #{tpu_custom_call.1} parent=1 // loop_exit
      _
    %668 = vsyncpa [#allocation3], 1
    %s669 = scalar_lea.sflag [#allocation3], 1
    %670 = vsyncpa %s669, 1

</llo_original>
